<compile_context>
chip_gen: v7x
topology: tpu7x:2x2x1
jax: 0.10.0
libtpu: 0.0.40
codegen_flags: <defaults>
</compile_context>

<pallas_src>
import numpy as np
import jax
import jax.numpy as jnp
from jax.experimental import pallas as pl
from jax.experimental.pallas import tpu as pltpu


def _tpu_vmem_capacity(default=64 * 1024 * 1024):
    """Physical VMEM bytes of the current TPU (conservative fallback if unknown)."""
    try:
        info = pltpu.get_tpu_info()
        cap = getattr(info, "vmem_capacity_bytes", None)
        if cap:
            return int(cap)
    except Exception:
        pass
    return default


def _pick_channel_tile(nc, plane_elems, itemsize, vmem_capacity):
    """Channel-planes per block: ~1-8 MiB blocks, sublane-dense, >=8 grid steps if possible."""
    plane_bytes = max(1, plane_elems * itemsize)
    # 2x in + 2x out double-buffered blocks must fit ~30% of VMEM; cap a block at 8 MiB.
    max_block_bytes = max(plane_bytes, min(8 << 20, (vmem_capacity * 3 // 10) // 4))
    tc_vmem_cap = max(1, max_block_bytes // plane_bytes)
    # Aim for >= 8 grid steps (2 TensorCores x pipeline depth) when planes are plentiful.
    tc_step_cap = max(1, pl.cdiv(nc, 8))
    tc = max(1, min(tc_vmem_cap, tc_step_cap, nc))
    # ...but prefer sublane-dense (multiple-of-8) blocks when VMEM and nc permit.
    if nc >= 8 and tc_vmem_cap >= 8:
        tc = max(8, (tc // 8) * 8)
    return int(max(1, min(tc, nc)))


def _make_flat_kernel(W, HW, c_center, c_box):
    """Kernel on (tc, H*W) lane-dense blocks. col_ref holds flat-index % W."""
    def kernel(col_ref, x_ref, o_ref):
        x = x_ref[...].astype(jnp.float32)               # (tc, HW)
        col = col_ref[...]                                # (1, HW) int32, broadcasts
        flat = jax.lax.broadcasted_iota(jnp.int32, (1, HW), 1)

        # W-direction neighbours: lane rolls of +/-1, zero border where col hits 0 / W-1.
        left = jnp.where(col > 0, pltpu.roll(x, shift=1 % HW, axis=1), 0.0)
        right = jnp.where(col < W - 1, pltpu.roll(x, shift=(HW - 1) % HW, axis=1), 0.0)
        row = x + left + right

        # H-direction neighbours of the row sums: rolls of +/-W, zero border at top/bottom.
        up = jnp.where(flat >= W, pltpu.roll(row, shift=W % HW, axis=1), 0.0)
        down = jnp.where(flat < HW - W, pltpu.roll(row, shift=(HW - W) % HW, axis=1), 0.0)
        box = row + up + down

        # out = (9*x - box3x3) / w_hpf  ==  depthwise conv with the high-pass filter.
        o_ref[...] = (c_center * x - c_box * box).astype(o_ref.dtype)
    return kernel


def _make_hw_kernel(H, W, c_center, c_box):
    """Kernel on (tc, H, W) blocks (used only when W is already a multiple of 128)."""
    def kernel(x_ref, o_ref):
        x = x_ref[...].astype(jnp.float32)                # (tc, H, W)
        lane = jax.lax.broadcasted_iota(jnp.int32, (1, H, W), 2)
        sub = jax.lax.broadcasted_iota(jnp.int32, (1, H, W), 1)

        left = jnp.where(lane > 0, pltpu.roll(x, shift=1 % W, axis=2), 0.0)
        right = jnp.where(lane < W - 1, pltpu.roll(x, shift=(W - 1) % W, axis=2), 0.0)
        row = x + left + right

        up = jnp.where(sub > 0, pltpu.roll(row, shift=1 % H, axis=1), 0.0)
        down = jnp.where(sub < H - 1, pltpu.roll(row, shift=(H - 1) % H, axis=1), 0.0)
        box = row + up + down

        o_ref[...] = (c_center * x - c_box * box).astype(o_ref.dtype)
    return kernel


def make_highpass(w_hpf: float):
    """Builds a callable equivalent to HighPass(w_hpf).forward for NCHW float inputs."""
    c_center = float(9.0 / w_hpf)   # coefficient on the centre tap after the rewrite
    c_box = float(1.0 / w_hpf)      # coefficient on the 3x3 box sum
    vmem_cap = _tpu_vmem_capacity()

    @jax.jit
    def forward(x):
        N, C, H, W = x.shape
        nc = N * C
        HW = H * W
        itemsize = int(x.dtype.itemsize)

        tc = _pick_channel_tile(nc, HW, itemsize, vmem_cap)
        grid = (pl.cdiv(nc, tc),)
        use_flat = (W % 128) != 0

        block_bytes = tc * HW * itemsize
        aux_bytes = (2 * HW * 4) if use_flat else 0
        usage = 4 * block_bytes + aux_bytes            # 2x in + 2x out double buffers
        vmem_limit = max(32 << 20, usage + (8 << 20))
        vmem_limit = int(min(vmem_limit, max(int(0.85 * vmem_cap), usage + (2 << 20))))

        cost = pl.CostEstimate(
            flops=11 * nc * HW,
            transcendentals=0,
            bytes_accessed=2 * nc * HW * itemsize + aux_bytes,
        )
        cparams = pltpu.CompilerParams(
            dimension_semantics=("parallel",),
            vmem_limit_bytes=vmem_limit,
        )

        if use_flat:
            # Lane-dense path: last dim is H*W (pure reshape of contiguous NCHW data).
            x2 = x.reshape(nc, HW)
            col_ids = (jnp.arange(HW, dtype=jnp.int32) % W).reshape(1, HW)
            out2 = pl.pallas_call(
                _make_flat_kernel(W, HW, c_center, c_box),
                out_shape=jax.ShapeDtypeStruct((nc, HW), x.dtype),
                grid_spec=pltpu.PrefetchScalarGridSpec(
                    num_scalar_prefetch=0,
                    grid=grid,
                    in_specs=[pl.BlockSpec((1, HW), lambda i: (0, 0)),
                              pl.BlockSpec((tc, HW), lambda i: (i, 0))],
                    out_specs=pl.BlockSpec((tc, HW), lambda i: (i, 0)),
                ),
                compiler_params=cparams,
                cost_estimate=cost,
            )(col_ids, x2)
        else:
            # W already a multiple of 128: keep the (tc, H, W) stencil path.
            x2 = x.reshape(nc, H, W)
            out2 = pl.pallas_call(
                _make_hw_kernel(H, W, c_center, c_box),
                out_shape=jax.ShapeDtypeStruct((nc, H, W), x.dtype),
                grid_spec=pltpu.PrefetchScalarGridSpec(
                    num_scalar_prefetch=0,
                    grid=grid,
                    in_specs=[pl.BlockSpec((tc, H, W), lambda i: (i, 0, 0))],
                    out_specs=pl.BlockSpec((tc, H, W), lambda i: (i, 0, 0)),
                ),
                compiler_params=cparams,
                cost_estimate=cost,
            )(x2)

        return out2.reshape(N, C, H, W)

    return forward


def _reference(x, w_hpf):
    """Pure-JAX reference mirroring F.conv2d(x, filt, padding=1, groups=C)."""
    C = x.shape[1]
    filt = (jnp.array([[-1.0, -1.0, -1.0],
                       [-1.0, 8.0, -1.0],
                       [-1.0, -1.0, -1.0]], dtype=jnp.float32) / jnp.float32(w_hpf))
    k = jnp.broadcast_to(filt[None, None, :, :], (C, 1, 3, 3))
    return jax.lax.conv_general_dilated(
        x.astype(jnp.float32), k, window_strides=(1, 1), padding=((1, 1), (1, 1)),
        dimension_numbers=("NCHW", "OIHW", "NCHW"),
        feature_group_count=C, precision=jax.lax.Precision.HIGHEST).astype(x.dtype)


if __name__ == "__main__":
    w_hpf = 1.0
    highpass = make_highpass(w_hpf)

    key = jax.random.PRNGKey(0)
    k0, k1, k2 = jax.random.split(key, 3)

    # Main shape: flat lane-dense path (W % 128 != 0).
    x = jax.random.normal(k0, (2, 4, 16, 16), dtype=jnp.float32)
    out = highpass(x)
    jax.block_until_ready(out)
    np.testing.assert_allclose(np.asarray(out), np.asarray(_reference(x, w_hpf)),
                               rtol=1e-5, atol=1e-5)

    # Odd/tiny shape: flat path with H*W not a multiple of 128 and a partial nc block.
    x_odd = jax.random.normal(k1, (1, 3, 5, 7), dtype=jnp.float32)
    out_odd = highpass(x_odd)
    jax.block_until_ready(out_odd)
    np.testing.assert_allclose(np.asarray(out_odd), np.asarray(_reference(x_odd, w_hpf)),
                               rtol=1e-5, atol=1e-5)

    # Lane-aligned shape: exercises the (tc, H, W) path (W % 128 == 0).
    x_al = jax.random.normal(k2, (1, 2, 8, 128), dtype=jnp.float32)
    out_al = highpass(x_al)
    jax.block_until_ready(out_al)
    np.testing.assert_allclose(np.asarray(out_al), np.asarray(_reference(x_al, w_hpf)),
                               rtol=1e-5, atol=1e-5)

    print("KERNEL_OK")
</pallas_src>

<mosaic_0001>
module attributes {stable_mosaic.version = 11 : i64} {
  func.func @kernel(%arg0: i32, %arg1: memref<1x256xi32, #tpu.memory_space<vmem>>, %arg2: memref<8x256xf32, #tpu.memory_space<vmem>>, %arg3: memref<8x256xf32, #tpu.memory_space<vmem>>) attributes {dimension_semantics = [#tpu.dimension_semantics<parallel>], iteration_bounds = array<i64: 1>, scalar_prefetch = 0 : i64, scratch_operands = 0 : i64, tpu.core_type = #tpu.core_type<tc>, window_params = [{pipeline_mode = #tpu.pipeline_mode<synchronous>, transform_indices = @transform_0, window_bounds = array<i64: 1, 256>}, {transform_indices = @transform_1, window_bounds = array<i64: 8, 256>}, {transform_indices = @transform_2, window_bounds = array<i64: 8, 256>}]} {
    %c0 = arith.constant 0 : index
    %c0_0 = arith.constant 0 : index
    %0 = vector.load %arg2[%c0, %c0_0] : memref<8x256xf32, #tpu.memory_space<vmem>>, vector<8x256xf32>
    %c0_1 = arith.constant 0 : index
    %c0_2 = arith.constant 0 : index
    %1 = vector.load %arg1[%c0_1, %c0_2] : memref<1x256xi32, #tpu.memory_space<vmem>>, vector<1x256xi32>
    %2 = tpu.iota {dimensions = array<i32: 1>} : vector<1x256xi32>
    %c0_i32 = arith.constant 0 : i32
    %3 = vector.broadcast %c0_i32 : i32 to vector<1x256xi32>
    %4 = arith.cmpi sgt, %1, %3 : vector<1x256xi32>
    %c1_i32 = arith.constant 1 : i32
    %5 = tpu.dynamic_rotate %0 by %c1_i32 dim 1 : vector<8x256xf32>, i32 -> vector<8x256xf32>
    %cst = arith.constant 0.000000e+00 : f32
    %6 = vector.shape_cast %4 : vector<1x256xi1> to vector<1x256xi1>
    %7 = vector.broadcast %6 : vector<1x256xi1> to vector<8x256xi1>
    %8 = vector.broadcast %cst : f32 to vector<8x256xf32>
    %9 = arith.select %7, %5, %8 : vector<8x256xi1>, vector<8x256xf32>
    %c15_i32 = arith.constant 15 : i32
    %10 = vector.broadcast %c15_i32 : i32 to vector<1x256xi32>
    %11 = arith.cmpi slt, %1, %10 : vector<1x256xi32>
    %c255_i32 = arith.constant 255 : i32
    %12 = tpu.dynamic_rotate %0 by %c255_i32 dim 1 : vector<8x256xf32>, i32 -> vector<8x256xf32>
    %cst_3 = arith.constant 0.000000e+00 : f32
    %13 = vector.shape_cast %11 : vector<1x256xi1> to vector<1x256xi1>
    %14 = vector.broadcast %13 : vector<1x256xi1> to vector<8x256xi1>
    %15 = vector.broadcast %cst_3 : f32 to vector<8x256xf32>
    %16 = arith.select %14, %12, %15 : vector<8x256xi1>, vector<8x256xf32>
    %17 = arith.addf %0, %9 : vector<8x256xf32>
    %18 = arith.addf %17, %16 : vector<8x256xf32>
    %c16_i32 = arith.constant 16 : i32
    %19 = vector.broadcast %c16_i32 : i32 to vector<1x256xi32>
    %20 = arith.cmpi sge, %2, %19 : vector<1x256xi32>
    %c16_i32_4 = arith.constant 16 : i32
    %21 = tpu.dynamic_rotate %18 by %c16_i32_4 dim 1 : vector<8x256xf32>, i32 -> vector<8x256xf32>
    %cst_5 = arith.constant 0.000000e+00 : f32
    %22 = vector.shape_cast %20 : vector<1x256xi1> to vector<1x256xi1>
    %23 = vector.broadcast %22 : vector<1x256xi1> to vector<8x256xi1>
    %24 = vector.broadcast %cst_5 : f32 to vector<8x256xf32>
    %25 = arith.select %23, %21, %24 : vector<8x256xi1>, vector<8x256xf32>
    %c240_i32 = arith.constant 240 : i32
    %26 = vector.broadcast %c240_i32 : i32 to vector<1x256xi32>
    %27 = arith.cmpi slt, %2, %26 : vector<1x256xi32>
    %c240_i32_6 = arith.constant 240 : i32
    %28 = tpu.dynamic_rotate %18 by %c240_i32_6 dim 1 : vector<8x256xf32>, i32 -> vector<8x256xf32>
    %cst_7 = arith.constant 0.000000e+00 : f32
    %29 = vector.shape_cast %27 : vector<1x256xi1> to vector<1x256xi1>
    %30 = vector.broadcast %29 : vector<1x256xi1> to vector<8x256xi1>
    %31 = vector.broadcast %cst_7 : f32 to vector<8x256xf32>
    %32 = arith.select %30, %28, %31 : vector<8x256xi1>, vector<8x256xf32>
    %33 = arith.addf %18, %25 : vector<8x256xf32>
    %34 = arith.addf %33, %32 : vector<8x256xf32>
    %cst_8 = arith.constant 9.000000e+00 : f32
    %35 = vector.broadcast %cst_8 : f32 to vector<8x256xf32>
    %36 = arith.mulf %35, %0 : vector<8x256xf32>
    %cst_9 = arith.constant 1.000000e+00 : f32
    %37 = vector.broadcast %cst_9 : f32 to vector<8x256xf32>
    %38 = arith.mulf %37, %34 : vector<8x256xf32>
    %39 = arith.subf %36, %38 : vector<8x256xf32>
    %c0_10 = arith.constant 0 : index
    %c0_11 = arith.constant 0 : index
    %40 = vector.load %arg3[%c0_10, %c0_11] : memref<8x256xf32, #tpu.memory_space<vmem>>, vector<8x256xf32>
    tpu.vector_store %arg3[%c0_10, %c0_11], %39 {strides = array<i32>} : memref<8x256xf32, #tpu.memory_space<vmem>>, vector<8x256xf32>,
    return
  }
  func.func @transform_0(%arg0: i32) -> (i32, i32) {
    %c0_i32 = arith.constant 0 : i32
    %c0_i32_0 = arith.constant 0 : i32
    %c0_i32_1 = arith.constant 0 : i32
    return %c0_i32, %c0_i32_0 : i32, i32
  }
  func.func @transform_1(%arg0: i32) -> (i32, i32) {
    %c0_i32 = arith.constant 0 : i32
    %c0_i32_0 = arith.constant 0 : i32
    return %arg0, %c0_i32 : i32, i32
  }
  func.func @transform_2(%arg0: i32) -> (i32, i32) {
    %c0_i32 = arith.constant 0 : i32
    %c0_i32_0 = arith.constant 0 : i32
    return %arg0, %c0_i32 : i32, i32
  }
}

</mosaic_0001>

<llo_original>
// kernel: forward.1
$region0: #{forward.1}
  #allocation0 [shape = 'u32[]', space=smem, size = 0x4, offset = 0x4, fixed_abs, tag = 'smem constant byte address 0x4 - core index']
  #allocation1 [shape = 'u32[144,128]{1,0:T(1,128)}', space=vmem, size = 0x12000, scoped, tag = 'internal scratch']
  %s0 = inlined_call_operand.vmem [shape: s32[1,256], index: 0, kind: input, shape index: {}]
  %s1 = inlined_call_operand.vmem [shape: f32[8,256], index: 1, kind: input, shape index: {}]
  %s2 = inlined_call_operand.vmem [shape: f32[8,256], index: 2, kind: output, shape index: {}]
  %s3 = sld [smem:[#allocation0]]
  $region18: #{forward.1} parent=0
    _
  %s5 = ssub.s32 1, %s3
  %s6 = scalar_select 0, %s5, %s3
  // Predicated region
  $region2: #{forward.1} parent=0 // pred_check
    _
  $region3: #{forward.1} parent=0 // pred_check_branch
    %8 = sbr.rel (0) target = $region5
  $region4: #{forward.1} parent=0 // pred_region
    _
  $region5: #{forward.1} parent=0 // pred_fallthru
    _
  // Predicated region
  $region6: #{forward.1} parent=0 // pred_check
    _
  $region7: #{forward.1} parent=0 // pred_check_branch
    %10 = sbr.rel (0) target = $region9
  $region8: #{forward.1} parent=0 // pred_region
    _
  $region9: #{forward.1} parent=0 // pred_fallthru
    _
  %v11 = vld [vmem:[%s1] sm:$0xff]
  %v12 = vld [vmem:[%s1 + $0x8] sm:$0xff]
  %v13 = vld [vmem:[%s0] sm:$0x3]
  %v14 = vlaneseq
  %v15 = vand.u32 %v14, 127
  %v16 = vadd.s32 %v15, 128
  %vm17 = vcmp.gt.s32.totalorder %v13, 0
  %18 = vrot.lane.b32.xlu0 %v11, 1
  %v19 = vpop.permute.xlu0 %18
  %20 = vrot.lane.b32.xlu0 %v12, 1
  %v21 = vpop.permute.xlu0 %20
  %vm22 = vcmp.lt.s32.totalorder %v15, 1
  %v23 = vsel %vm22, %v19, %v21
  %v24 = vsel %vm22, %v21, %v19
  %v25 = vsel %vm17, 1, 0
  %v26 = vlaneseq
  %v27 = vshrl.u32 %v26, 7
  %v28 = vsub.s32 0, %v27
  %v29 = vrot.slane %v25, %v28
  %v30 = vlaneseq
  %v31 = vshrl.u32 %v30, 7
  %v32 = vsub.s32 1, %v31
  %v33 = vrot.slane %v25, %v32
  %vm34 = vcmp.eq.s32.totalorder %v29, 1
  %vm35 = vcmp.eq.s32.totalorder %v33, 1
  %v36 = vsel %vm34, %v24, 0.0
  %v37 = vsel %vm35, %v23, 0.0
  %vm38 = vcmp.lt.s32.totalorder %v13, 15
  %39 = vrot.lane.b32.xlu0 %v11, 127
  %v40 = vpop.permute.xlu0 %39
  %41 = vrot.lane.b32.xlu0 %v12, 127
  %v42 = vpop.permute.xlu0 %41
  %vm43 = vcmp.lt.s32.totalorder %v15, 127
  %v44 = vsel %vm43, %v40, %v42
  %v45 = vsel %vm43, %v42, %v40
  %v46 = vsel %vm38, 1, 0
  %v47 = vlaneseq
  %v48 = vshrl.u32 %v47, 7
  %v49 = vsub.s32 0, %v48
  %v50 = vrot.slane %v46, %v49
  %v51 = vlaneseq
  %v52 = vshrl.u32 %v51, 7
  %v53 = vsub.s32 1, %v52
  %v54 = vrot.slane %v46, %v53
  %vm55 = vcmp.eq.s32.totalorder %v50, 1
  %vm56 = vcmp.eq.s32.totalorder %v54, 1
  %v57 = vsel %vm55, %v44, 0.0
  %v58 = vsel %vm56, %v45, 0.0
  %v59 = vadd.f32 %v11, %v36
  %v60 = vadd.f32 %v12, %v37
  %v61 = vadd.f32 %v59, %v57
  %v62 = vadd.f32 %v60, %v58
  %vm63 = vcmp.ge.s32.totalorder %v15, 16
  %vm64 = vcmp.ge.s32.totalorder %v16, 16
  %65 = vrot.lane.b32.xlu0 %v61, 16
  %v66 = vpop.permute.xlu0 %65
  %67 = vrot.lane.b32.xlu0 %v62, 16
  %v68 = vpop.permute.xlu0 %67
  %vm69 = vcmp.lt.s32.totalorder %v15, 16
  %v70 = vsel %vm69, %v66, %v68
  %v71 = vsel %vm69, %v68, %v66
  %v72 = vsel %vm63, 1, 0
  %v73 = vsel %vm64, 1, 0
  %vm74 = vcmp.eq.s32.totalorder %v72, 1
  %vm75 = vcmp.eq.s32.totalorder %v73, 1
  %v76 = vsel %vm74, %v71, 0.0
  %v77 = vsel %vm75, %v70, 0.0
  %vm78 = vcmp.lt.s32.totalorder %v15, 240
  %vm79 = vcmp.lt.s32.totalorder %v16, 240
  %80 = vrot.lane.b32.xlu0 %v61, 112
  %v81 = vpop.permute.xlu0 %80
  %82 = vrot.lane.b32.xlu0 %v62, 112
  %v83 = vpop.permute.xlu0 %82
  %vm84 = vcmp.lt.s32.totalorder %v15, 112
  %v85 = vsel %vm84, %v81, %v83
  %v86 = vsel %vm84, %v83, %v81
  %v87 = vsel %vm78, 1, 0
  %v88 = vsel %vm79, 1, 0
  %vm89 = vcmp.eq.s32.totalorder %v87, 1
  %vm90 = vcmp.eq.s32.totalorder %v88, 1
  %v91 = vsel %vm89, %v85, 0.0
  %v92 = vsel %vm90, %v86, 0.0
  %v93 = vadd.f32 %v61, %v76
  %v94 = vadd.f32 %v62, %v77
  %v95 = vadd.f32 %v93, %v91
  %v96 = vadd.f32 %v94, %v92
  %v97 = vmul.f32 %v11, 9.0
  %v98 = vmul.f32 %v12, 9.0
  %v99 = vsub.f32 %v97, %v95
  %v100 = vsub.f32 %v98, %v96
  %101 = vst [vmem:[%s2] sm:$0xff] %v99
  %102 = vst [vmem:[%s2 + $0x8] sm:$0xff] %v100
  // Predicated region
  $region10: #{forward.1} parent=0 // pred_check
    _
  $region11: #{forward.1} parent=0 // pred_check_branch
    %104 = sbr.rel (0) target = $region13
  $region12: #{forward.1} parent=0 // pred_region
    _
  $region13: #{forward.1} parent=0 // pred_fallthru
    _
  // Predicated region
  $region14: #{forward.1} parent=0 // pred_check
    _
  $region15: #{forward.1} parent=0 // pred_check_branch
    %106 = sbr.rel (0) target = $region17
  $region16: #{forward.1} parent=0 // pred_region
    _
  $region17: #{forward.1} parent=0 // pred_fallthru
    _

</llo_original>
